<compile_context>
chip_gen: v7x
topology: tpu7x:2x2x1
jax: 0.10.0
libtpu: 0.0.40
codegen_flags: <defaults>
</compile_context>

<pallas_src>
import jax
import jax.numpy as jnp
from jax.experimental import pallas as pl
from jax.experimental.pallas import tpu as pltpu


def _conv1x1_kernel(w_ref, x_ref, o_ref):
    """out[t, o, m] = sum_c w[o, c] * x[t, c, m] for one (TN, TM) tile."""
    w = w_ref[...].astype(jnp.float32)            # (C_out, C_in), stays resident
    tn, c_in, _ = x_ref.shape
    c_out = w.shape[0]
    use_mxu = (c_in >= 8) and (c_out >= 8)        # trace-time constant

    for t in range(tn):                           # static unroll, tn <= 8
        x = x_ref[t].astype(jnp.float32)          # (C_in, TM), lane-dense
        if use_mxu:
            # MXU path: standard (C_out, C_in) @ (C_in, TM) with f32 accumulate.
            acc = jnp.dot(w, x, preferred_element_type=jnp.float32)
        else:
            # VPU path: unrolled broadcast multiply-add chain; C_in is far too
            # small to be worth the MXU on this bandwidth-bound op.
            acc = w[:, 0:1] * x[0:1, :]           # broadcasts to (C_out, TM)
            for c in range(1, c_in):
                acc = acc + w[:, c:c + 1] * x[c:c + 1, :]
        o_ref[t] = acc.astype(o_ref.dtype)


def _pick_tiles(n, c_in, c_out, m, itemsize):
    """Choose (TN, TM): lane-dense M tile + batch tile under a VMEM budget."""
    # Lane-dense M tile: a multiple of 128 when possible (unmasked, wide DMA
    # rows); otherwise the whole M (block dims must be 128-multiples or full).
    if m % 128 == 0:
        tm = min(m, 2048)
    else:
        tm = m
    # Batch tile: largest of {8, 4, 2} that divides N and keeps the
    # double-buffered in+out blocks comfortably inside the scoped-VMEM
    # default on every chip (v5e 16 MiB ... v7x 32 MiB).
    budget = 4 * 1024 * 1024
    tn = 1
    for cand in (8, 4, 2):
        blk_bytes = cand * (c_in + c_out) * tm * itemsize * 2  # 2 = double buffer
        if n % cand == 0 and blk_bytes <= budget:
            tn = cand
            break
    return tn, tm


def downsample_c(x_nchw, weight, stride):
    """Forward pass of DownsampleC.

    x_nchw: (N, C_in, H, W)
    weight: (C_out, C_in, 1, 1) or (C_out, C_in)  -- Conv2d 1x1 weight, no bias
    stride: int
    returns: (N, C_out, H_out, W_out), H_out = (H - 1)//stride + 1
    """
    N, C_in, H, W = x_nchw.shape
    w = weight.reshape(weight.shape[0], C_in)             # (C_out, C_in)
    C_out = w.shape[0]

    # 1x1 conv with stride == pure spatial subsample: one XLA pass, then only
    # contiguous (free) reshapes -- no transposes anywhere.
    x_s = x_nchw[:, :, ::stride, ::stride] if stride != 1 else x_nchw
    H_out, W_out = x_s.shape[2], x_s.shape[3]
    M = H_out * W_out
    x_cm = x_s.reshape(N, C_in, M)                        # contiguous reshape

    TN, TM = _pick_tiles(N, C_in, C_out, M, x_nchw.dtype.itemsize)
    grid = (N // TN, pl.cdiv(M, TM))

    out_cm = pl.pallas_call(
        _conv1x1_kernel,
        out_shape=jax.ShapeDtypeStruct((N, C_out, M), x_nchw.dtype),
        grid_spec=pltpu.PrefetchScalarGridSpec(
            num_scalar_prefetch=0,
            grid=grid,
            in_specs=[
                # Weight: constant block index -> fetched once, stays resident.
                pl.BlockSpec((C_out, C_in), lambda n, m: (0, 0)),
                # Activations: TN samples x one lane-dense M tile per step.
                pl.BlockSpec((TN, C_in, TM), lambda n, m: (n, 0, m)),
            ],
            out_specs=pl.BlockSpec((TN, C_out, TM), lambda n, m: (n, 0, m)),
        ),
        compiler_params=pltpu.CompilerParams(
            # Both axes independent -> megacore sharding on v7x.
            dimension_semantics=("parallel", "parallel"),
        ),
    )(w, x_cm)

    # Contiguous reshape back to NCHW (no transpose).
    return out_cm.reshape(N, C_out, H_out, W_out)


if __name__ == "__main__":
    # Module config: nIn=4, nOut=8, stride=2  (assert stride != 1 or nIn != nOut)
    nIn, nOut, stride = 4, 8, 2
    N, H, W = 2, 16, 16

    key = jax.random.PRNGKey(0)
    kx, kw = jax.random.split(key)
    x = jax.random.normal(kx, (N, nIn, H, W), dtype=jnp.float32)
    weight = jax.random.normal(kw, (nOut, nIn, 1, 1), dtype=jnp.float32) * 0.1

    fwd = jax.jit(lambda xx, ww: downsample_c(xx, ww, stride))
    y = jax.block_until_ready(fwd(x, weight))

    # Reference: strided 1x1 conv == subsample + channel einsum.
    ref = jnp.einsum(
        "nchw,oc->nohw", x[:, :, ::stride, ::stride], weight.reshape(nOut, nIn)
    )
    H_out = (H - 1) // stride + 1
    W_out = (W - 1) // stride + 1
    assert y.shape == (N, nOut, H_out, W_out), y.shape
    assert jnp.allclose(y, ref, atol=1e-5, rtol=1e-5)

    print("KERNEL_OK")
</pallas_src>

<mosaic_0001>
module attributes {stable_mosaic.version = 11 : i64} {
  func.func @_conv1x1_kernel(%arg0: i32, %arg1: i32, %arg2: memref<8x4xf32, #tpu.memory_space<vmem>>, %arg3: memref<2x4x64xf32, #tpu.memory_space<vmem>>, %arg4: memref<2x8x64xf32, #tpu.memory_space<vmem>>) attributes {dimension_semantics = [#tpu.dimension_semantics<parallel>, #tpu.dimension_semantics<parallel>], iteration_bounds = array<i64: 1, 1>, scalar_prefetch = 0 : i64, scratch_operands = 0 : i64, tpu.core_type = #tpu.core_type<tc>, window_params = [{pipeline_mode = #tpu.pipeline_mode<synchronous>, transform_indices = @transform_0, window_bounds = array<i64: 8, 4>}, {transform_indices = @transform_1, window_bounds = array<i64: 2, 4, 64>}, {transform_indices = @transform_2, window_bounds = array<i64: 2, 8, 64>}]} {
    %c0 = arith.constant 0 : index
    %c0_0 = arith.constant 0 : index
    %0 = vector.load %arg2[%c0, %c0_0] : memref<8x4xf32, #tpu.memory_space<vmem>>, vector<8x4xf32>
    %c0_1 = arith.constant 0 : index
    %c0_2 = arith.constant 0 : index
    %c0_3 = arith.constant 0 : index
    %1 = vector.load %arg3[%c0_1, %c0_2, %c0_3] : memref<2x4x64xf32, #tpu.memory_space<vmem>>, vector<1x4x64xf32>
    %2 = vector.shape_cast %1 : vector<1x4x64xf32> to vector<4x64xf32>
    %3 = vector.extract_strided_slice %0 {offsets = [0, 0], sizes = [8, 1], strides = [1, 1]} : vector<8x4xf32> to vector<8x1xf32>
    %4 = vector.extract_strided_slice %2 {offsets = [0, 0], sizes = [1, 64], strides = [1, 1]} : vector<4x64xf32> to vector<1x64xf32>
    %5 = vector.broadcast %3 : vector<8x1xf32> to vector<8x64xf32>
    %6 = vector.broadcast %4 : vector<1x64xf32> to vector<8x64xf32>
    %7 = arith.mulf %5, %6 : vector<8x64xf32>
    %8 = vector.extract_strided_slice %0 {offsets = [0, 1], sizes = [8, 1], strides = [1, 1]} : vector<8x4xf32> to vector<8x1xf32>
    %9 = vector.extract_strided_slice %2 {offsets = [1, 0], sizes = [1, 64], strides = [1, 1]} : vector<4x64xf32> to vector<1x64xf32>
    %10 = vector.broadcast %8 : vector<8x1xf32> to vector<8x64xf32>
    %11 = vector.broadcast %9 : vector<1x64xf32> to vector<8x64xf32>
    %12 = arith.mulf %10, %11 : vector<8x64xf32>
    %13 = arith.addf %7, %12 : vector<8x64xf32>
    %14 = vector.extract_strided_slice %0 {offsets = [0, 2], sizes = [8, 1], strides = [1, 1]} : vector<8x4xf32> to vector<8x1xf32>
    %15 = vector.extract_strided_slice %2 {offsets = [2, 0], sizes = [1, 64], strides = [1, 1]} : vector<4x64xf32> to vector<1x64xf32>
    %16 = vector.broadcast %14 : vector<8x1xf32> to vector<8x64xf32>
    %17 = vector.broadcast %15 : vector<1x64xf32> to vector<8x64xf32>
    %18 = arith.mulf %16, %17 : vector<8x64xf32>
    %19 = arith.addf %13, %18 : vector<8x64xf32>
    %20 = vector.extract_strided_slice %0 {offsets = [0, 3], sizes = [8, 1], strides = [1, 1]} : vector<8x4xf32> to vector<8x1xf32>
    %21 = vector.extract_strided_slice %2 {offsets = [3, 0], sizes = [1, 64], strides = [1, 1]} : vector<4x64xf32> to vector<1x64xf32>
    %22 = vector.broadcast %20 : vector<8x1xf32> to vector<8x64xf32>
    %23 = vector.broadcast %21 : vector<1x64xf32> to vector<8x64xf32>
    %24 = arith.mulf %22, %23 : vector<8x64xf32>
    %25 = arith.addf %19, %24 : vector<8x64xf32>
    %c0_4 = arith.constant 0 : index
    %c0_5 = arith.constant 0 : index
    %c0_6 = arith.constant 0 : index
    %26 = vector.load %arg4[%c0_4, %c0_5, %c0_6] : memref<2x8x64xf32, #tpu.memory_space<vmem>>, vector<1x8x64xf32>
    %27 = vector.shape_cast %26 : vector<1x8x64xf32> to vector<8x64xf32>
    %28 = vector.shape_cast %25 : vector<8x64xf32> to vector<1x8x64xf32>
    tpu.vector_store %arg4[%c0_4, %c0_5, %c0_6], %28 {strides = array<i32>} : memref<2x8x64xf32, #tpu.memory_space<vmem>>, vector<1x8x64xf32>,
    %c1 = arith.constant 1 : index
    %c0_7 = arith.constant 0 : index
    %c0_8 = arith.constant 0 : index
    %29 = vector.load %arg3[%c1, %c0_7, %c0_8] : memref<2x4x64xf32, #tpu.memory_space<vmem>>, vector<1x4x64xf32>
    %30 = vector.shape_cast %29 : vector<1x4x64xf32> to vector<4x64xf32>
    %31 = vector.extract_strided_slice %0 {offsets = [0, 0], sizes = [8, 1], strides = [1, 1]} : vector<8x4xf32> to vector<8x1xf32>
    %32 = vector.extract_strided_slice %30 {offsets = [0, 0], sizes = [1, 64], strides = [1, 1]} : vector<4x64xf32> to vector<1x64xf32>
    %33 = vector.broadcast %31 : vector<8x1xf32> to vector<8x64xf32>
    %34 = vector.broadcast %32 : vector<1x64xf32> to vector<8x64xf32>
    %35 = arith.mulf %33, %34 : vector<8x64xf32>
    %36 = vector.extract_strided_slice %0 {offsets = [0, 1], sizes = [8, 1], strides = [1, 1]} : vector<8x4xf32> to vector<8x1xf32>
    %37 = vector.extract_strided_slice %30 {offsets = [1, 0], sizes = [1, 64], strides = [1, 1]} : vector<4x64xf32> to vector<1x64xf32>
    %38 = vector.broadcast %36 : vector<8x1xf32> to vector<8x64xf32>
    %39 = vector.broadcast %37 : vector<1x64xf32> to vector<8x64xf32>
    %40 = arith.mulf %38, %39 : vector<8x64xf32>
    %41 = arith.addf %35, %40 : vector<8x64xf32>
    %42 = vector.extract_strided_slice %0 {offsets = [0, 2], sizes = [8, 1], strides = [1, 1]} : vector<8x4xf32> to vector<8x1xf32>
    %43 = vector.extract_strided_slice %30 {offsets = [2, 0], sizes = [1, 64], strides = [1, 1]} : vector<4x64xf32> to vector<1x64xf32>
    %44 = vector.broadcast %42 : vector<8x1xf32> to vector<8x64xf32>
    %45 = vector.broadcast %43 : vector<1x64xf32> to vector<8x64xf32>
    %46 = arith.mulf %44, %45 : vector<8x64xf32>
    %47 = arith.addf %41, %46 : vector<8x64xf32>
    %48 = vector.extract_strided_slice %0 {offsets = [0, 3], sizes = [8, 1], strides = [1, 1]} : vector<8x4xf32> to vector<8x1xf32>
    %49 = vector.extract_strided_slice %30 {offsets = [3, 0], sizes = [1, 64], strides = [1, 1]} : vector<4x64xf32> to vector<1x64xf32>
    %50 = vector.broadcast %48 : vector<8x1xf32> to vector<8x64xf32>
    %51 = vector.broadcast %49 : vector<1x64xf32> to vector<8x64xf32>
    %52 = arith.mulf %50, %51 : vector<8x64xf32>
    %53 = arith.addf %47, %52 : vector<8x64xf32>
    %c1_9 = arith.constant 1 : index
    %c0_10 = arith.constant 0 : index
    %c0_11 = arith.constant 0 : index
    %54 = vector.load %arg4[%c1_9, %c0_10, %c0_11] : memref<2x8x64xf32, #tpu.memory_space<vmem>>, vector<1x8x64xf32>
    %55 = vector.shape_cast %54 : vector<1x8x64xf32> to vector<8x64xf32>
    %56 = vector.shape_cast %53 : vector<8x64xf32> to vector<1x8x64xf32>
    tpu.vector_store %arg4[%c1_9, %c0_10, %c0_11], %56 {strides = array<i32>} : memref<2x8x64xf32, #tpu.memory_space<vmem>>, vector<1x8x64xf32>,
    return
  }
  func.func @transform_0(%arg0: i32, %arg1: i32) -> (i32, i32) {
    %c0_i32 = arith.constant 0 : i32
    %c0_i32_0 = arith.constant 0 : i32
    %c0_i32_1 = arith.constant 0 : i32
    return %c0_i32, %c0_i32_0 : i32, i32
  }
  func.func @transform_1(%arg0: i32, %arg1: i32) -> (i32, i32, i32) {
    %c0_i32 = arith.constant 0 : i32
    %c0_i32_0 = arith.constant 0 : i32
    return %arg0, %c0_i32, %arg1 : i32, i32, i32
  }
  func.func @transform_2(%arg0: i32, %arg1: i32) -> (i32, i32, i32) {
    %c0_i32 = arith.constant 0 : i32
    %c0_i32_0 = arith.constant 0 : i32
    return %arg0, %c0_i32, %arg1 : i32, i32, i32
  }
}

</mosaic_0001>

<llo_original>
// kernel: _lambda_.1
$region0: #{_lambda_.1}
  #allocation0 [shape = 'u32[]', space=smem, size = 0x4, offset = 0x4, fixed_abs, tag = 'smem constant byte address 0x4 - core index']
  #allocation1 [shape = 'u32[144,128]{1,0:T(1,128)}', space=vmem, size = 0x12000, scoped, tag = 'internal scratch']
  %s0 = inlined_call_operand.vmem [shape: f32[8,4], index: 0, kind: input, shape index: {}]
  %s1 = inlined_call_operand.vmem [shape: f32[2,4,64], index: 1, kind: input, shape index: {}]
  %s2 = inlined_call_operand.vmem [shape: f32[2,8,64], index: 2, kind: output, shape index: {}]
  %s3 = sld [smem:[#allocation0]]
  $region18: #{_lambda_.1} parent=0
    _
  %s5 = ssub.s32 1, %s3
  %s6 = scalar_select 0, %s5, %s3
  // Predicated region
  $region2: #{_lambda_.1} parent=0 // pred_check
    _
  $region3: #{_lambda_.1} parent=0 // pred_check_branch
    %8 = sbr.rel (0) target = $region5
  $region4: #{_lambda_.1} parent=0 // pred_region
    _
  $region5: #{_lambda_.1} parent=0 // pred_fallthru
    _
  // Predicated region
  $region6: #{_lambda_.1} parent=0 // pred_check
    _
  $region7: #{_lambda_.1} parent=0 // pred_check_branch
    %10 = sbr.rel (0) target = $region9
  $region8: #{_lambda_.1} parent=0 // pred_region
    _
  $region9: #{_lambda_.1} parent=0 // pred_fallthru
    _
  %v11 = vld [vmem:[%s0] sm:$0xff]
  %v12 = vld [vmem:[%s1] sm:$0xf]
  %14 = vset.pattern.permute.xlu0 0
  %15 = vperm.xlu0 %14, %v11
  %v16 = vpop.permute.xlu0 %15
  %v18 = vlaneseq
  %v19 = vshrl.u32 %v18, 7
  %v20 = vsub.s32 0, %v19
  %v21 = vrot.slane %v12, %v20
  %v22 = vmul.f32 %v16, %v21
  %23 = vset.pattern.permute.xlu0 1
  %24 = vperm.xlu0 %23, %v11
  %v25 = vpop.permute.xlu0 %24
  %v27 = vlaneseq
  %v28 = vshrl.u32 %v27, 7
  %v29 = vsub.s32 1, %v28
  %v30 = vrot.slane %v12, %v29
  %v31 = vmul.f32 %v25, %v30
  %v32 = vadd.f32 %v22, %v31
  %33 = vset.pattern.permute.xlu0 2
  %34 = vperm.xlu0 %33, %v11
  %v35 = vpop.permute.xlu0 %34
  %v37 = vlaneseq
  %v38 = vshrl.u32 %v37, 7
  %v39 = vsub.s32 2, %v38
  %v40 = vrot.slane %v12, %v39
  %v41 = vmul.f32 %v35, %v40
  %v42 = vadd.f32 %v32, %v41
  %43 = vset.pattern.permute.xlu0 3
  %44 = vperm.xlu0 %43, %v11
  %v45 = vpop.permute.xlu0 %44
  %v47 = vlaneseq
  %v48 = vshrl.u32 %v47, 7
  %v49 = vsub.s32 3, %v48
  %v50 = vrot.slane %v12, %v49
  %v51 = vmul.f32 %v45, %v50
  %v52 = vadd.f32 %v42, %v51
  %vm53 = vcmask 523264
  %54 = vst.msk [vmem:[%s2] sm:$0xff] %vm53, %v52
  %s55 = scalar_lea.vmem %s1, 4
  %v56 = vld [vmem:[%s55] sm:$0xf]
  %v57 = vlaneseq
  %v58 = vshrl.u32 %v57, 7
  %v59 = vsub.s32 0, %v58
  %v60 = vrot.slane %v56, %v59
  %v61 = vmul.f32 %v16, %v60
  %v62 = vlaneseq
  %v63 = vshrl.u32 %v62, 7
  %v64 = vsub.s32 1, %v63
  %v65 = vrot.slane %v56, %v64
  %v66 = vmul.f32 %v25, %v65
  %v67 = vadd.f32 %v61, %v66
  %v68 = vlaneseq
  %v69 = vshrl.u32 %v68, 7
  %v70 = vsub.s32 2, %v69
  %v71 = vrot.slane %v56, %v70
  %v72 = vmul.f32 %v35, %v71
  %v73 = vadd.f32 %v67, %v72
  %v74 = vlaneseq
  %v75 = vshrl.u32 %v74, 7
  %v76 = vsub.s32 3, %v75
  %v77 = vrot.slane %v56, %v76
  %v78 = vmul.f32 %v45, %v77
  %v79 = vadd.f32 %v73, %v78
  %s80 = scalar_lea.vmem %s2, 8
  %81 = vst.msk [vmem:[%s80] sm:$0xff] %vm53, %v79
  // Predicated region
  $region10: #{_lambda_.1} parent=0 // pred_check
    _
  $region11: #{_lambda_.1} parent=0 // pred_check_branch
    %83 = sbr.rel (0) target = $region13
  $region12: #{_lambda_.1} parent=0 // pred_region
    _
  $region13: #{_lambda_.1} parent=0 // pred_fallthru
    _
  // Predicated region
  $region14: #{_lambda_.1} parent=0 // pred_check
    _
  $region15: #{_lambda_.1} parent=0 // pred_check_branch
    %85 = sbr.rel (0) target = $region17
  $region16: #{_lambda_.1} parent=0 // pred_region
    _
  $region17: #{_lambda_.1} parent=0 // pred_fallthru
    _

</llo_original>
